<compile_context>
chip_gen: v7x
topology: tpu7x:2x2x1
jax: 0.10.0
libtpu: 0.0.40
codegen_flags: <defaults>
</compile_context>

<pallas_src>
import functools

import jax
import jax.numpy as jnp
from jax.experimental import pallas as pl
from jax.experimental.pallas import tpu as pltpu

_VMEM_LIMIT = 48 * 1024 * 1024  # <= v7x 64 MiB physical; comfortable on v5e/v6e


def _round_up(x, m):
    return (x + m - 1) // m * m


# ---------------------------------------------------------------------------
# Pass 1: per-split BatchNorm batch statistics (sum, sum of squares).
# ---------------------------------------------------------------------------
def _stats_kernel(inp_ref, w_ref, stats_ref, *, n_valid):
    s = pl.program_id(0)
    i = pl.program_id(1)
    tn = inp_ref.shape[0]

    @pl.when(i == 0)
    def _():
        stats_ref[...] = jnp.zeros_like(stats_ref)

    # (tn, Cin) bf16 @ (Cin, C) bf16 -> f32 on the MXU (recomputed per pass,
    # never written to HBM).
    x = jnp.dot(inp_ref[...], w_ref[...], preferred_element_type=jnp.float32)
    xcat = jnp.concatenate([x, x * x], axis=-1)                    # (tn, 2C)

    # Column sums via a single row-of-ones MXU matmul; the "ones" rows double
    # as the validity mask for zero-padded tail rows.
    g = s * pl.num_programs(1) + i
    row = g * tn + jax.lax.broadcasted_iota(jnp.int32, (8, tn), 1)
    valid = (row < n_valid).astype(jnp.float32)                    # (8, tn)
    stats_ref[0] += jnp.dot(valid, xcat, preferred_element_type=jnp.float32)


# ---------------------------------------------------------------------------
# Pass 2: per-split (P_pad, C) segment max of relu(x * scale + shift),
#         P-tiled, lane-dense (C, tn) orientation.
# ---------------------------------------------------------------------------
def _segmax_kernel(inp_ref, wt_ref, scale_ref, shift_ref, inv_ref, segmax_ref,
                   *, seg_block):
    i = pl.program_id(1)

    @pl.when(i == 0)
    def _():
        segmax_ref[...] = jnp.zeros_like(segmax_ref)

    # x^T directly from the MXU: (C, Cin) bf16 contracted with (tn, Cin) bf16
    # over the last dims -> (C, tn) f32, tn in lanes (lane-dense).
    x_t = jax.lax.dot_general(wt_ref[...], inp_ref[...],
                              (((1,), (1,)), ((), ())),
                              preferred_element_type=jnp.float32)
    x_t = jnp.maximum(x_t * scale_ref[...] + shift_ref[...], 0.0)  # (C, tn)

    tn = x_t.shape[1]
    inv = inv_ref[...]                                             # (1, tn)
    num_pb = segmax_ref.shape[1] // seg_block

    @pl.loop(0, num_pb)
    def _(pb):
        base = pl.multiple_of(pb * seg_block, seg_block)
        seg_ids = base + jax.lax.broadcasted_iota(jnp.int32, (seg_block, tn), 0)
        mask = seg_ids == inv                                      # (sb, tn)
        # Post-ReLU x >= 0  =>  0 is the masked-max identity; padded rows carry
        # an out-of-range id and contribute nothing to real segments.
        blk = jnp.max(jnp.where(mask[:, None, :], x_t[None, :, :], 0.0),
                      axis=-1)                                     # (sb, C)
        cur = segmax_ref[0, pl.ds(base, seg_block), :]
        segmax_ref[0, pl.ds(base, seg_block), :] = jnp.maximum(cur, blk)


# ---------------------------------------------------------------------------
# Pass 3: normalize + ReLU, P-tiled one-hot MXU gather of x_max[unq_inv],
#         write the concatenated output directly (no jnp.concatenate copy).
# ---------------------------------------------------------------------------
def _output_kernel(inp_ref, w_ref, scale_ref, shift_ref, invc_ref, segmax_ref,
                   out_ref, *, gather_block):
    x = jnp.dot(inp_ref[...], w_ref[...], preferred_element_type=jnp.float32)
    x = jnp.maximum(x * scale_ref[...] + shift_ref[...], 0.0)      # (tn, C)
    tn, c = x.shape
    inv = invc_ref[...]                                            # (tn, 1)
    num_gb = segmax_ref.shape[0] // gather_block

    def body(pb, g):
        base = pl.multiple_of(pb * gather_block, gather_block)
        lane_ids = base + jax.lax.broadcasted_iota(
            jnp.int32, (tn, gather_block), 1)
        onehot = (lane_ids == inv).astype(jnp.float32)             # (tn, gb)
        return g + jnp.dot(onehot,
                           segmax_ref[pl.ds(base, gather_block), :],
                           preferred_element_type=jnp.float32)

    gathered = jax.lax.fori_loop(0, num_gb, body,
                                 jnp.zeros((tn, c), jnp.float32))

    out_ref[:, 0:c] = x.astype(out_ref.dtype)
    out_ref[:, c:] = gathered.astype(out_ref.dtype)


def pfn_layer_v2(inputs, unq_inv, weight, gamma, beta, *, num_segments,
                 eps=1e-3, tile_rows=2048, seg_block=8, gather_block=256,
                 num_splits=1, out_dtype=jnp.float32):
    """PFNLayerV2 forward (use_norm=True, last_layer=False).

    inputs: (N, Cin) float, unq_inv: (N,) int in [0, num_segments),
    weight: (Cin, C) == PyTorch linear.weight.T, gamma/beta: (C,).
    num_splits=2 shards the two reduction passes across both TensorCores
    (useful on v7x; harmless elsewhere).  gather_block should be a multiple of
    seg_block.  Returns (N, 2*C) == concat([x, x_max[unq_inv]], dim=1).
    """
    n, cin = inputs.shape
    c = weight.shape[1]
    num_splits = max(int(num_splits), 1)

    # Row tile: multiple of 128 (lane/sublane legality of every BlockSpec),
    # but not over-padded for tiny inputs.
    tn = _round_up(min(tile_rows, max(pl.cdiv(n, num_splits), 1)), 128)
    n_pad = _round_up(n, num_splits * tn)
    num_tiles = n_pad // tn
    tiles_per_split = num_tiles // num_splits

    # Segment-axis padding / blocking.
    p_pad = _round_up(num_segments, 8)
    gather_block = min(gather_block, p_pad)
    seg_block = min(seg_block, p_pad)
    p_pad = _round_up(_round_up(p_pad, gather_block), seg_block)

    inp = jnp.pad(inputs.astype(jnp.bfloat16), ((0, n_pad - n), (0, 0)))
    w = weight.astype(jnp.bfloat16)        # (Cin, C)
    w_t = w.T                              # (C, Cin) for the transposed-RHS pass
    # Padded ids carry the out-of-range value `num_segments` so padded rows
    # never touch a real segment.
    inv = jnp.pad(unq_inv.astype(jnp.int32), (0, n_pad - n),
                  constant_values=num_segments)
    inv_row = inv.reshape(1, n_pad)        # lane-dense ids for pass 2
    inv_col = inv.reshape(n_pad, 1)        # column ids for pass 3's one-hot

    def _params(sem):
        return pltpu.CompilerParams(dimension_semantics=sem,
                                    vmem_limit_bytes=_VMEM_LIMIT)

    # ---- Pass 1: BN batch statistics (per-split partials) -------------------
    stats_part = pl.pallas_call(
        functools.partial(_stats_kernel, n_valid=n),
        grid=(num_splits, tiles_per_split),
        in_specs=[pl.BlockSpec((tn, cin),
                               lambda s, i: (s * tiles_per_split + i, 0)),
                  pl.BlockSpec((cin, c), lambda s, i: (0, 0))],
        out_specs=pl.BlockSpec((1, 8, 2 * c), lambda s, i: (s, 0, 0)),
        out_shape=jax.ShapeDtypeStruct((num_splits, 8, 2 * c), jnp.float32),
        compiler_params=_params(("parallel", "arbitrary")),
        cost_estimate=pl.CostEstimate(
            flops=2 * n_pad * c * (cin + 16), transcendentals=0,
            bytes_accessed=2 * n_pad * cin + 2 * cin * c
            + num_splits * 64 * c),
    )(inp, w)

    # ---- Tiny (C,)-sized epilogue: fold BN into a per-channel affine --------
    sums = stats_part[:, 0, :].sum(axis=0)                 # (2C,)
    mean = sums[:c] / n
    var = jnp.maximum(sums[c:] / n - mean * mean, 0.0)     # biased (training)
    inv_std = jax.lax.rsqrt(var + eps)
    scale_v = gamma.astype(jnp.float32) * inv_std
    shift_v = beta.astype(jnp.float32) - mean * scale_v
    scale_row = scale_v.reshape(1, c)
    shift_row = shift_v.reshape(1, c)
    scale_col = scale_v.reshape(c, 1)
    shift_col = shift_v.reshape(c, 1)

    # ---- Pass 2: per-split segment max ---------------------------------------
    seg_part = pl.pallas_call(
        functools.partial(_segmax_kernel, seg_block=seg_block),
        grid=(num_splits, tiles_per_split),
        in_specs=[pl.BlockSpec((tn, cin),
                               lambda s, i: (s * tiles_per_split + i, 0)),
                  pl.BlockSpec((c, cin), lambda s, i: (0, 0)),
                  pl.BlockSpec((c, 1), lambda s, i: (0, 0)),
                  pl.BlockSpec((c, 1), lambda s, i: (0, 0)),
                  pl.BlockSpec((1, tn),
                               lambda s, i: (0, s * tiles_per_split + i))],
        out_specs=pl.BlockSpec((1, p_pad, c), lambda s, i: (s, 0, 0)),
        out_shape=jax.ShapeDtypeStruct((num_splits, p_pad, c), jnp.float32),
        compiler_params=_params(("parallel", "arbitrary")),
        cost_estimate=pl.CostEstimate(
            flops=2 * n_pad * c * cin + n_pad * p_pad * c, transcendentals=0,
            bytes_accessed=n_pad * (2 * cin + 4)
            + num_splits * 4 * p_pad * c),
    )(inp, w_t, scale_col, shift_col, inv_row)

    seg_max = seg_part.max(axis=0)                         # (P_pad, C)

    # ---- Pass 3: normalize + gather + concatenated write --------------------
    out = pl.pallas_call(
        functools.partial(_output_kernel, gather_block=gather_block),
        grid=(num_tiles,),
        in_specs=[pl.BlockSpec((tn, cin), lambda i: (i, 0)),
                  pl.BlockSpec((cin, c), lambda i: (0, 0)),
                  pl.BlockSpec((1, c), lambda i: (0, 0)),
                  pl.BlockSpec((1, c), lambda i: (0, 0)),
                  pl.BlockSpec((tn, 1), lambda i: (i, 0)),
                  pl.BlockSpec((p_pad, c), lambda i: (0, 0))],
        out_specs=pl.BlockSpec((tn, 2 * c), lambda i: (i, 0)),
        out_shape=jax.ShapeDtypeStruct((n_pad, 2 * c), out_dtype),
        compiler_params=_params(("parallel",)),
        cost_estimate=pl.CostEstimate(
            flops=2 * n_pad * c * (cin + p_pad), transcendentals=0,
            bytes_accessed=n_pad * (2 * cin + 4 + 8 * c) + 4 * p_pad * c),
    )(inp, w, scale_row, shift_row, inv_col, seg_max)

    return out[:n]


def _reference(inputs, unq_inv, weight, gamma, beta, num_segments, eps=1e-3):
    # Matches the kernel's bf16 MXU linear (f32 accumulation); rest in f32.
    x = jnp.dot(inputs.astype(jnp.bfloat16), weight.astype(jnp.bfloat16),
                preferred_element_type=jnp.float32)
    mean = x.mean(axis=0, keepdims=True)
    var = ((x - mean) ** 2).mean(axis=0, keepdims=True)
    x = (x - mean) / jnp.sqrt(var + eps) * gamma + beta
    x = jnp.maximum(x, 0.0)
    x_max = jax.ops.segment_max(x, unq_inv, num_segments=num_segments)
    x_max = jnp.where(jnp.isneginf(x_max), 0.0, x_max)
    return jnp.concatenate([x, x_max[unq_inv]], axis=1)


if __name__ == "__main__":
    # Small shapes consistent with the module: N points, in_channels features,
    # out_channels=32 -> internal C = 16 (not last layer), P pillars.
    # tile_rows=128 + num_splits=2 exercises multi-tile streaming, row padding,
    # the per-split partial-stats / partial-segmax combine, and P-block loops.
    N, CIN, OUT_CH, P = 300, 16, 32, 10
    C = OUT_CH // 2

    key = jax.random.PRNGKey(0)
    k_in, k_w, k_g, k_b, k_perm = jax.random.split(key, 5)

    inputs = jax.random.normal(k_in, (N, CIN), dtype=jnp.float32)
    # PyTorch Linear weight is (Cout, Cin); the kernel takes its transpose.
    weight = jax.random.normal(k_w, (CIN, C), dtype=jnp.float32) * 0.1
    gamma = 1.0 + 0.1 * jax.random.normal(k_g, (C,), dtype=jnp.float32)
    beta = 0.1 * jax.random.normal(k_b, (C,), dtype=jnp.float32)
    # unq_inv as produced by torch.unique(return_inverse=True): every id appears.
    unq_inv = jax.random.permutation(k_perm, jnp.arange(N, dtype=jnp.int32) % P)

    out = pfn_layer_v2(inputs, unq_inv, weight, gamma, beta,
                       num_segments=P, tile_rows=128, num_splits=2)
    out = jax.block_until_ready(out)

    ref = _reference(inputs, unq_inv, weight, gamma, beta, P)
    assert out.shape == (N, OUT_CH), out.shape
    max_err = float(jnp.max(jnp.abs(out - ref)))
    assert jnp.allclose(out, ref, atol=2e-3, rtol=2e-3), max_err
    print("KERNEL_OK")
</pallas_src>

<mosaic_0001>
module attributes {stable_mosaic.version = 11 : i64} {
  func.func @_stats_kernel(%arg0: i32, %arg1: i32, %arg2: memref<128x16xbf16, #tpu.memory_space<vmem>>, %arg3: memref<16x16xbf16, #tpu.memory_space<vmem>>, %arg4: memref<1x8x32xf32, #tpu.memory_space<vmem>>) attributes {dimension_semantics = [#tpu.dimension_semantics<parallel>, #tpu.dimension_semantics<arbitrary>], iteration_bounds = array<i64: 2, 2>, scalar_prefetch = 0 : i64, scratch_operands = 0 : i64, tpu.core_type = #tpu.core_type<tc>, window_params = [{transform_indices = @transform_0, window_bounds = array<i64: 128, 16>}, {pipeline_mode = #tpu.pipeline_mode<synchronous>, transform_indices = @transform_1, window_bounds = array<i64: 16, 16>}, {transform_indices = @transform_2, window_bounds = array<i64: 1, 8, 32>}]} {
    %c0_i32 = arith.constant 0 : i32
    %0 = arith.cmpi eq, %arg1, %c0_i32 : i32
    %1 = arith.extui %0 : i1 to i32
    %c0_i32_0 = arith.constant 0 : i32
    %2 = arith.cmpi ne, %1, %c0_i32_0 : i32
    scf.if %2 {
      %cst_11 = arith.constant 0.000000e+00 : f32
      %25 = vector.broadcast %cst_11 : f32 to vector<1x8x32xf32>
      %c0_12 = arith.constant 0 : index
      %c0_13 = arith.constant 0 : index
      %c0_14 = arith.constant 0 : index
      %26 = vector.load %arg4[%c0_12, %c0_13, %c0_14] : memref<1x8x32xf32, #tpu.memory_space<vmem>>, vector<1x8x32xf32>
      tpu.vector_store %arg4[%c0_12, %c0_13, %c0_14], %25 {strides = array<i32>} : memref<1x8x32xf32, #tpu.memory_space<vmem>>, vector<1x8x32xf32>,
    } else {
    }
    %c0 = arith.constant 0 : index
    %c0_1 = arith.constant 0 : index
    %3 = vector.load %arg2[%c0, %c0_1] : memref<128x16xbf16, #tpu.memory_space<vmem>>, vector<128x16xbf16>
    %c0_2 = arith.constant 0 : index
    %c0_3 = arith.constant 0 : index
    %4 = vector.load %arg3[%c0_2, %c0_3] : memref<16x16xbf16, #tpu.memory_space<vmem>>, vector<16x16xbf16>
    %cst = arith.constant dense<0.000000e+00> : vector<128x16xf32>
    %5 = tpu.matmul %3, %4, %cst {dimension_numbers = #tpu.dot_dimension_numbers<[1], [0], [0], [1], [0, 0, 1, 1], [], []>} : vector<128x16xbf16>, vector<16x16xbf16>, vector<128x16xf32> -> vector<128x16xf32>
    %6 = arith.mulf %5, %5 : vector<128x16xf32>
    %7 = tpu.concatenate %5, %6 in 1 : vector<128x16xf32>, vector<128x16xf32> -> vector<128x32xf32>
    %c2_i32 = arith.constant 2 : i32
    %8 = arith.muli %arg0, %c2_i32 : i32
    %9 = arith.addi %8, %arg1 : i32
    %c128_i32 = arith.constant 128 : i32
    %10 = arith.muli %9, %c128_i32 : i32
    %11 = tpu.iota {dimensions = array<i32: 1>} : vector<8x128xi32>
    %12 = vector.broadcast %10 : i32 to vector<8x128xi32>
    %13 = arith.addi %12, %11 : vector<8x128xi32>
    %c300_i32 = arith.constant 300 : i32
    %14 = vector.broadcast %c300_i32 : i32 to vector<8x128xi32>
    %15 = arith.cmpi slt, %13, %14 : vector<8x128xi32>
    %16 = arith.extui %15 : vector<8x128xi1> to vector<8x128xi32>
    %17 = arith.sitofp %16 : vector<8x128xi32> to vector<8x128xf32>
    %c0_4 = arith.constant 0 : index
    %c0_5 = arith.constant 0 : index
    %c0_6 = arith.constant 0 : index
    %18 = vector.load %arg4[%c0_4, %c0_5, %c0_6] : memref<1x8x32xf32, #tpu.memory_space<vmem>>, vector<1x8x32xf32>
    %19 = vector.shape_cast %18 : vector<1x8x32xf32> to vector<8x32xf32>
    %cst_7 = arith.constant dense<0.000000e+00> : vector<8x32xf32>
    %20 = tpu.matmul %17, %7, %cst_7 {dimension_numbers = #tpu.dot_dimension_numbers<[1], [0], [0], [1], [0, 0, 1, 1], [], []>} : vector<8x128xf32>, vector<128x32xf32>, vector<8x32xf32> -> vector<8x32xf32>
    %21 = arith.addf %19, %20 : vector<8x32xf32>
    %c0_8 = arith.constant 0 : index
    %c0_9 = arith.constant 0 : index
    %c0_10 = arith.constant 0 : index
    %22 = vector.load %arg4[%c0_8, %c0_9, %c0_10] : memref<1x8x32xf32, #tpu.memory_space<vmem>>, vector<1x8x32xf32>
    %23 = vector.shape_cast %22 : vector<1x8x32xf32> to vector<8x32xf32>
    %24 = vector.shape_cast %21 : vector<8x32xf32> to vector<1x8x32xf32>
    tpu.vector_store %arg4[%c0_8, %c0_9, %c0_10], %24 {strides = array<i32>} : memref<1x8x32xf32, #tpu.memory_space<vmem>>, vector<1x8x32xf32>,
    return
  }
  func.func @transform_0(%arg0: i32, %arg1: i32) -> (i32, i32) {
    %c2_i32 = arith.constant 2 : i32
    %0 = arith.muli %arg0, %c2_i32 : i32
    %1 = arith.addi %0, %arg1 : i32
    %c0_i32 = arith.constant 0 : i32
    %c0_i32_0 = arith.constant 0 : i32
    return %1, %c0_i32 : i32, i32
  }
  func.func @transform_1(%arg0: i32, %arg1: i32) -> (i32, i32) {
    %c0_i32 = arith.constant 0 : i32
    %c0_i32_0 = arith.constant 0 : i32
    %c0_i32_1 = arith.constant 0 : i32
    return %c0_i32, %c0_i32_0 : i32, i32
  }
  func.func @transform_2(%arg0: i32, %arg1: i32) -> (i32, i32, i32) {
    %c0_i32 = arith.constant 0 : i32
    %c0_i32_0 = arith.constant 0 : i32
    %c0_i32_1 = arith.constant 0 : i32
    return %arg0, %c0_i32, %c0_i32_0 : i32, i32, i32
  }
}

</mosaic_0001>

<llo_original>
// kernel: tpu_custom_call.1
$region0: #{tpu_custom_call.1}
  #allocation0 [shape = 'u32[]', space=smem, size = 0x4, offset = 0x4, fixed_abs, tag = 'smem constant byte address 0x4 - core index']
  #allocation1 [shape = 'u32[144,128]{1,0:T(1,128)}', space=vmem, size = 0x12000, scoped, tag = 'internal scratch']
  %s0 = inlined_call_operand.vmem [shape: bf16[512,16], index: 0, kind: input, shape index: {}]
  %s1 = inlined_call_operand.vmem [shape: bf16[16,16], index: 1, kind: input, shape index: {}]
  %s2 = inlined_call_operand.hbm [shape: f32[2,8,32], index: 2, kind: output, shape index: {}]
  %s3 = sld [smem:[#allocation0]]
  $region45: #{tpu_custom_call.1} parent=0
    _
  %s5 = ssub.s32 1, %s3
  %s6 = scalar_select 0, %s5, %s3
  $region1: #{tpu_custom_call.1} parent=0
    #allocation2 [shape = 'u8[8192]{0}', space=vmem, size = 0x2000, scoped, tag = 'output window, operand 0']
    #allocation3 [shape = 's32[2]{0}', space=sflag, size = 0x8, scoped, tag = 'scoped memory for tpu_custom_call.1']
    %7 = vsyncpa [#allocation3], 0
    %s8 = scalar_lea.sflag [#allocation3], 1
    %9 = vsyncpa %s8, 0
    loop: start=0, step=1, limit=6
    $region2: #{tpu_custom_call.1} parent=1 // loop_pre_header
      _
    $region3: #{tpu_custom_call.1} parent=1 // loop_header
      %s11 = sphi 0, %s15
      %p12 = scmp.ge.s32.totalorder %s11, 6
      %s18 = sphi 0, %s30
      %s19 = sphi 0, %s26
      %s20 = sphi 0, %s18
      %s21 = sphi 0, %s19
      %s22 = sphi 0, %s20
      %s23 = sphi 0, %s21
      %s37 = sphi 0, %s39
      %s40 = sphi 0, %s37
      %s41 = sphi 0, %s40
      %s57 = sphi 0, %s41
      %s61 = sphi 0, %s61
      %s63 = sphi 0, %s61
      %s64 = sphi 0, %s63
      %s78 = sphi 0, %s64
      %s84 = sphi 0, %s86
      %s87 = sphi 0, %s84
      %s88 = sphi 0, %s87
      %s104 = sphi 0, %s88
    $region4: #{tpu_custom_call.1} parent=1 // loop_header_branch
      %14 = sbr.rel (%p12) target = $region8
    $region5: #{tpu_custom_call.1} parent=1 // loop_body
      %s16 = ssub.s32 %s11, 1
      %s17 = ssub.s32 %s11, 2
      %s24 = sadd.s32 1, %s19
      %p25 = scmp.ge.s32.totalorder %s24, 2
      %s26 = scalar_select %p25, 0, %s24
      %s27 = sadd.s32 1, %s18
      %s28 = scalar_select %p25, %s27, %s18
      %p29 = scmp.ge.s32.totalorder %s28, 2
      %s30 = scalar_select %p29, 0, %s28
      %s31 = smul.u32 %s18, 2
      %s32 = sadd.s32 %s31, %s19
      %s33 = smul.u32 %s30, 2
      %s34 = sadd.s32 %s33, %s26
      %s35 = ssub.s32 %s32, %s34
      %p36 = scmp.eq.s32.totalorder %s35, 0
      %s38 = sadd.s32 %s37, 1
      %s39 = scalar_select %p36, %s37, %s38
      %p42 = pneg %p36
      %p43 = scmp.eq.s32.totalorder %s11, 3
      %p44 = por %p42, %p43
      %p45 = scmp.ne.s32.totalorder %s37, %s40
      %p46 = scmp.eq.s32.totalorder %s11, 0
      %p47 = por %p45, %p46
      %p48 = scmp.ne.s32.totalorder %s37, %s40
      %p49 = scmp.eq.s32.totalorder %s16, 3
      %p50 = por %p48, %p49
      %p51 = scmp.ne.s32.totalorder %s40, %s41
      %p52 = scmp.eq.s32.totalorder %s16, 0
      %p53 = por %p51, %p52
      %p54 = scmp.ne.s32.totalorder %s40, %s41
      %p55 = scmp.eq.s32.totalorder %s17, 3
      %p56 = por %p54, %p55
      %p58 = scmp.ne.s32.totalorder %s41, %s57
      %p59 = scmp.eq.s32.totalorder %s17, 0
      %p60 = por %p58, %p59
      %s62 = sadd.s32 %s61, 1
      %p65 = scmp.eq.s32.totalorder %s11, 3
      %p66 = scmp.ne.s32.totalorder %s61, %s63
      %p67 = scmp.eq.s32.totalorder %s11, 0
      %p68 = por %p66, %p67
      %p69 = scmp.ne.s32.totalorder %s61, %s63
      %p70 = scmp.eq.s32.totalorder %s16, 3
      %p71 = por %p69, %p70
      %p72 = scmp.ne.s32.totalorder %s63, %s64
      %p73 = scmp.eq.s32.totalorder %s16, 0
      %p74 = por %p72, %p73
      %p75 = scmp.ne.s32.totalorder %s63, %s64
      %p76 = scmp.eq.s32.totalorder %s17, 3
      %p77 = por %p75, %p76
      %p79 = scmp.ne.s32.totalorder %s64, %s78
      %p80 = scmp.eq.s32.totalorder %s17, 0
      %p81 = por %p79, %p80
      %s82 = ssub.s32 %s18, %s30
      %p83 = scmp.eq.s32.totalorder %s82, 0
      %s85 = sadd.s32 %s84, 1
      %s86 = scalar_select %p83, %s84, %s85
      %p89 = pneg %p83
      %p90 = scmp.eq.s32.totalorder %s11, 3
      %p91 = por %p89, %p90
      %p92 = scmp.ne.s32.totalorder %s84, %s87
      %p93 = scmp.eq.s32.totalorder %s11, 0
      %p94 = por %p92, %p93
      %p95 = scmp.ne.s32.totalorder %s84, %s87
      %p96 = scmp.eq.s32.totalorder %s16, 3
      %p97 = por %p95, %p96
      %p98 = scmp.ne.s32.totalorder %s87, %s88
      %p99 = scmp.eq.s32.totalorder %s16, 0
      %p100 = por %p98, %p99
      %p101 = scmp.ne.s32.totalorder %s87, %s88
      %p102 = scmp.eq.s32.totalorder %s17, 3
      %p103 = por %p101, %p102
      %p105 = scmp.ne.s32.totalorder %s88, %s104
      %p106 = scmp.eq.s32.totalorder %s17, 0
      %p107 = por %p105, %p106
      %p108 = scmp.le.s32.totalorder 1, %s11
      %p109 = scmp.lt.s32.totalorder %s11, 5
      %p110 = pnand %p108, %p109
      %p111 = pneg %p110
      // Predicated region
      $region9: #{tpu_custom_call.1} parent=5 // pred_check
        _
      $region10: #{tpu_custom_call.1} parent=5 // pred_check_branch
        %113 = sbr.rel (%p110) target = $region12
      $region11: #{tpu_custom_call.1} parent=5 // pred_region
        %s114 = ssub.s32 %s11, 1
        // Predicated region
        $region13: #{tpu_custom_call.1} parent=11 // pred_check
          %p115 = pneg %p74
        $region14: #{tpu_custom_call.1} parent=11 // pred_check_branch
          %117 = sbr.rel (%p115) target = $region16
        $region15: #{tpu_custom_call.1} parent=11 // pred_region
          _
        $region16: #{tpu_custom_call.1} parent=11 // pred_fallthru
          _
      $region12: #{tpu_custom_call.1} parent=5 // pred_fallthru
        _
      %p118 = scmp.lt.s32.totalorder %s11, 4
      // Predicated region
      $region17: #{tpu_custom_call.1} parent=5 // pred_check
        %p119 = pneg %p118
      $region18: #{tpu_custom_call.1} parent=5 // pred_check_branch
        %121 = sbr.rel (%p119) target = $region20
      $region19: #{tpu_custom_call.1} parent=5 // pred_region
        // Predicated region
        $region21: #{tpu_custom_call.1} parent=19 // pred_check
          %p122 = pneg %p47
        $region22: #{tpu_custom_call.1} parent=19 // pred_check_branch
          %124 = sbr.rel (%p122) target = $region24
        $region23: #{tpu_custom_call.1} parent=19 // pred_region
          %s125 = smul.u32 %s18, 2
          %s126 = sadd.s32 %s125, %s19
          %s127 = smul.u32 16, %s126
          %p128 = scmp.lt.s32.totalorder %s127, 63
          %s129 = scalar_select %p128, %s127, 63
          %s130 = smul.addr %s129, 4
          %s131 = scalar_lea.vmem %s0, %s130
          %s132 = smul.u32 %s18, 2
          %s133 = sadd.s32 %s132, %s19
          %s134 = smul.u32 16, %s133
        $region24: #{tpu_custom_call.1} parent=19 // pred_fallthru
          _
      $region20: #{tpu_custom_call.1} parent=5 // pred_fallthru
        _
      %p135 = scmp.le.s32.totalorder 1, %s11
      %p136 = scmp.lt.s32.totalorder %s11, 5
      %p137 = pnand %p135, %p136
      %p138 = pneg %p137
      // Predicated region
      $region25: #{tpu_custom_call.1} parent=5 // pred_check
        _
      $region26: #{tpu_custom_call.1} parent=5 // pred_check_branch
        %140 = sbr.rel (%p137) target = $region28
      $region27: #{tpu_custom_call.1} parent=5 // pred_region
        %s141 = ssub.s32 %s11, 1
        %s142 = smul.u32 %s20, 2
        %s143 = sadd.s32 %s142, %s21
        %s144 = smul.u32 16, %s143
        %p145 = scmp.lt.s32.totalorder %s144, 63
        %s146 = scalar_select %p145, %s144, 63
        %s147 = smul.addr %s146, 4
        %s148 = scalar_lea.vmem %s0, %s147
        %p149 = pneg %p53
        %p150 = pneg %p50
        %p151 = pneg %p74
        %p152 = pneg %p71
        %p153 = pneg %p100
        %p154 = pneg %p97
        %s155 = sand.u32 %s87, 1
        %s156 = scalar_lea.sflag [#allocation3], %s155
        %s157 = sand.u32 %s87, 1
        %s158 = smul.addr %s157, 8
        %s159 = scalar_lea.vmem [#allocation2], %s158
        %s160 = smul.u32 %s20, 2
        %s161 = sadd.s32 %s160, %s21
        %s162 = smul.u32 16, %s161
        %p163 = scmp.lt.s32.totalorder %s162, 63
        %s164 = scalar_select %p163, %s162, 63
        %s165 = smul.addr %s164, 4
        %s166 = scalar_lea.vmem %s0, %s165
        %s167 = smul.u32 %s20, 2
        %s168 = sadd.s32 %s167, %s21
        %s169 = smul.u32 16, %s168
        %p171 = scmp.eq.s32.totalorder %s21, 0
        // Predicated region
        $region29: #{tpu_custom_call.1} parent=27 // pred_check
          %p172 = pneg %p171
        $region30: #{tpu_custom_call.1} parent=27 // pred_check_branch
          %174 = sbr.rel (%p172) target = $region32
        $region31: #{tpu_custom_call.1} parent=27 // pred_region
          %vm175 = vcmask 261120
          %176 = vst.msk [vmem:[%s159] sm:$0xff] %vm175, 0.0
        $region32: #{tpu_custom_call.1} parent=27 // pred_fallthru
          _
        %v177 = vld [vmem:[%s166] sm:$0xf]
        %v178 = vld [vmem:[%s166 + $0x4] sm:$0xf]
        %v179 = vld [vmem:[%s166 + $0x8] sm:$0xf]
        %v180 = vld [vmem:[%s166 + $0xc] sm:$0xf]
        %v181 = vld [vmem:[%s166 + $0x10] sm:$0xf]
        %v182 = vld [vmem:[%s166 + $0x14] sm:$0xf]
        %v183 = vld [vmem:[%s166 + $0x18] sm:$0xf]
        %v184 = vld [vmem:[%s166 + $0x1c] sm:$0xf]
        %v185 = vld [vmem:[%s166 + $0x20] sm:$0xf]
        %v186 = vld [vmem:[%s166 + $0x24] sm:$0xf]
        %v187 = vld [vmem:[%s166 + $0x28] sm:$0xf]
        %v188 = vld [vmem:[%s166 + $0x2c] sm:$0xf]
        %v189 = vld [vmem:[%s166 + $0x30] sm:$0xf]
        %v190 = vld [vmem:[%s166 + $0x34] sm:$0xf]
        %v191 = vld [vmem:[%s166 + $0x38] sm:$0xf]
        %v192 = vld [vmem:[%s166 + $0x3c] sm:$0xf]
        %v193 = vld [vmem:[%s1] sm:$0xf]
        %v194 = vld [vmem:[%s1 + $0x4] sm:$0xf]
        %v211 = vunpack.c.l.b16 %v177
        %v212 = vunpack.c.l.b16 %v178
        %v213 = vunpack.c.l.b16 %v179
        %v214 = vunpack.c.l.b16 %v180
        %v215 = vunpack.c.l.b16 %v181
        %v216 = vunpack.c.l.b16 %v182
        %v217 = vunpack.c.l.b16 %v183
        %v218 = vunpack.c.l.b16 %v184
        %v219 = vunpack.c.l.b16 %v185
        %v220 = vunpack.c.l.b16 %v186
        %v221 = vunpack.c.l.b16 %v187
        %v222 = vunpack.c.l.b16 %v188
        %v223 = vunpack.c.l.b16 %v189
        %v224 = vunpack.c.l.b16 %v190
        %v225 = vunpack.c.l.b16 %v191
        %v226 = vunpack.c.l.b16 %v192
        %v227 = vpack.c.b16 %v212, %v211
        %v228 = vpack.c.b16 %v214, %v213
        %v229 = vpack.c.b16 %v216, %v215
        %v230 = vpack.c.b16 %v218, %v217
        %v231 = vpack.c.b16 %v220, %v219
        %v232 = vpack.c.b16 %v222, %v221
        %v233 = vpack.c.b16 %v224, %v223
        %v234 = vpack.c.b16 %v226, %v225
        %v237 = vunpack.c.l.b16 %v193
        %v238 = vunpack.c.l.b16 %v194
        %v239 = vpack.c.b16 %v238, %v237
        %vm241 = vcmask 130048
        %v243 = vsel %vm241, %v227, 0
        %v246 = vsel %vm241, %v228, 0
        %v249 = vsel %vm241, %v229, 0
        %v252 = vsel %vm241, %v230, 0
        %v255 = vsel %vm241, %v231, 0
        %v258 = vsel %vm241, %v232, 0
        %v261 = vsel %vm241, %v233, 0
        %v264 = vsel %vm241, %v234, 0
        %266 = vmatprep.subr.bf16.mxu0 0
        %267 = vmatpush1.bf16.msra.mxu0 %v239
        %268 = vmatprep.subr.bf16.mxu0 0
        %269 = vmatpush1.bf16.msra.mxu0 0
        %270 = vmatprep.subr.bf16.mxu0 0
        %271 = vmatpush1.bf16.msra.mxu0 0
        %272 = vmatprep.subr.bf16.mxu0 0
        %273 = vmatpush1.bf16.msra.mxu0 0
        %274 = vmatprep.subr.bf16.mxu0 0
        %275 = vmatpush1.bf16.msra.mxu0 0
        %276 = vmatprep.subr.bf16.mxu0 0
        %277 = vmatpush1.bf16.msra.mxu0 0
        %278 = vmatprep.subr.bf16.mxu0 0
        %279 = vmatpush1.bf16.msra.mxu0 0
        %280 = vmatprep.subr.bf16.mxu0 0
        %281 = vmatpush1.bf16.msra.mxu0 0
        %282 = vmatprep.subr.bf16.mxu0 0
        %283 = vmatpush1.bf16.msra.mxu0 0
        %284 = vmatprep.subr.bf16.mxu0 0
        %285 = vmatpush1.bf16.msra.mxu0 0
        %286 = vmatprep.subr.bf16.mxu0 0
        %287 = vmatpush1.bf16.msra.mxu0 0
        %288 = vmatprep.subr.bf16.mxu0 0
        %289 = vmatpush1.bf16.msra.mxu0 0
        %290 = vmatprep.subr.bf16.mxu0 0
        %291 = vmatpush1.bf16.msra.mxu0 0
        %292 = vmatprep.subr.bf16.mxu0 0
        %293 = vmatpush1.bf16.msra.mxu0 0
        %294 = vmatprep.subr.bf16.mxu0 0
        %295 = vmatpush1.bf16.msra.mxu0 0
        %296 = vmatprep.subr.bf16.mxu0 0
        %297 = vmatpush1.bf16.msra.mxu0 0
        %298 = vmatprep.mubr.bf16.mxu0 0
        %299 = vmatmul.mubr.bf16.gmra.mrb[0].mxu0 %v243
        %v300 = vpop.f32.mrb[0].mxu0
        %v301 = vadd.f32 0.0, %v300
        %v302 = vpop.f32.mrb[0].mxu0
        %v303 = vpop.f32.mrb[0].mxu0
        %v304 = vadd.f32 0.0, %v303
        %v305 = vpop.f32.mrb[0].mxu0
        %306 = vmatprep.mubr.bf16.mxu0 0
        %307 = vmatmul.mubr.bf16.gmra.mrb[0].mxu0 %v246
        %v308 = vpop.f32.mrb[0].mxu0
        %v309 = vadd.f32 0.0, %v308
        %v310 = vpop.f32.mrb[0].mxu0
        %v311 = vpop.f32.mrb[0].mxu0
        %v312 = vadd.f32 0.0, %v311
        %v313 = vpop.f32.mrb[0].mxu0
        %314 = vmatprep.mubr.bf16.mxu0 0
        %315 = vmatmul.mubr.bf16.gmra.mrb[0].mxu0 %v249
        %v316 = vpop.f32.mrb[0].mxu0
        %v317 = vadd.f32 0.0, %v316
        %v318 = vpop.f32.mrb[0].mxu0
        %v319 = vpop.f32.mrb[0].mxu0
        %v320 = vadd.f32 0.0, %v319
        %v321 = vpop.f32.mrb[0].mxu0
        %322 = vmatprep.mubr.bf16.mxu0 0
        %323 = vmatmul.mubr.bf16.gmra.mrb[0].mxu0 %v252
        %v324 = vpop.f32.mrb[0].mxu0
        %v325 = vadd.f32 0.0, %v324
        %v326 = vpop.f32.mrb[0].mxu0
        %v327 = vpop.f32.mrb[0].mxu0
        %v328 = vadd.f32 0.0, %v327
        %v329 = vpop.f32.mrb[0].mxu0
        %330 = vmatprep.mubr.bf16.mxu0 0
        %331 = vmatmul.mubr.bf16.gmra.mrb[0].mxu0 %v255
        %v332 = vpop.f32.mrb[0].mxu0
        %v333 = vadd.f32 0.0, %v332
        %v334 = vpop.f32.mrb[0].mxu0
        %v335 = vpop.f32.mrb[0].mxu0
        %v336 = vadd.f32 0.0, %v335
        %v337 = vpop.f32.mrb[0].mxu0
        %338 = vmatprep.mubr.bf16.mxu0 0
        %339 = vmatmul.mubr.bf16.gmra.mrb[0].mxu0 %v258
        %v340 = vpop.f32.mrb[0].mxu0
        %v341 = vadd.f32 0.0, %v340
        %v342 = vpop.f32.mrb[0].mxu0
        %v343 = vpop.f32.mrb[0].mxu0
        %v344 = vadd.f32 0.0, %v343
        %v345 = vpop.f32.mrb[0].mxu0
        %346 = vmatprep.mubr.bf16.mxu0 0
        %347 = vmatmul.mubr.bf16.gmra.mrb[0].mxu0 %v261
        %v348 = vpop.f32.mrb[0].mxu0
        %v349 = vadd.f32 0.0, %v348
        %v350 = vpop.f32.mrb[0].mxu0
        %v351 = vpop.f32.mrb[0].mxu0
        %v352 = vadd.f32 0.0, %v351
        %v353 = vpop.f32.mrb[0].mxu0
        %354 = vmatprep.mubr.bf16.mxu0 0
        %355 = vmatmul.mubr.bf16.gmra.mrb[0].mxu0 %v264
        %v356 = vpop.f32.mrb[0].mxu0
        %v357 = vadd.f32 0.0, %v356
        %v358 = vpop.f32.mrb[0].mxu0
        %v359 = vpop.f32.mrb[0].mxu0
        %v360 = vadd.f32 0.0, %v359
        %v361 = vpop.f32.mrb[0].mxu0
        %362 = vdwg.mxu0
        %v363 = vmul.f32 %v301, %v301
        %v364 = vmul.f32 %v304, %v304
        %v365 = vmul.f32 %v309, %v309
        %v366 = vmul.f32 %v312, %v312
        %v367 = vmul.f32 %v317, %v317
        %v368 = vmul.f32 %v320, %v320
        %v369 = vmul.f32 %v325, %v325
        %v370 = vmul.f32 %v328, %v328
        %v371 = vmul.f32 %v333, %v333
        %v372 = vmul.f32 %v336, %v336
        %v373 = vmul.f32 %v341, %v341
        %v374 = vmul.f32 %v344, %v344
        %v375 = vmul.f32 %v349, %v349
        %v376 = vmul.f32 %v352, %v352
        %v377 = vmul.f32 %v357, %v357
        %v378 = vmul.f32 %v360, %v360
        %395 = vrot.lane.b32.xlu0 %v363, 16
        %v396 = vpop.permute.xlu0 %395
        %397 = vrot.lane.b32.xlu0 %v364, 16
        %v398 = vpop.permute.xlu0 %397
        %399 = vrot.lane.b32.xlu0 %v365, 16
        %v400 = vpop.permute.xlu0 %399
        %401 = vrot.lane.b32.xlu0 %v366, 16
        %v402 = vpop.permute.xlu0 %401
        %403 = vrot.lane.b32.xlu0 %v367, 16
        %v404 = vpop.permute.xlu0 %403
        %405 = vrot.lane.b32.xlu0 %v368, 16
        %v406 = vpop.permute.xlu0 %405
        %407 = vrot.lane.b32.xlu0 %v369, 16
        %v408 = vpop.permute.xlu0 %407
        %409 = vrot.lane.b32.xlu0 %v370, 16
        %v410 = vpop.permute.xlu0 %409
        %411 = vrot.lane.b32.xlu0 %v371, 16
        %v412 = vpop.permute.xlu0 %411
        %413 = vrot.lane.b32.xlu0 %v372, 16
        %v414 = vpop.permute.xlu0 %413
        %415 = vrot.lane.b32.xlu0 %v373, 16
        %v416 = vpop.permute.xlu0 %415
        %417 = vrot.lane.b32.xlu0 %v374, 16
        %v418 = vpop.permute.xlu0 %417
        %419 = vrot.lane.b32.xlu0 %v375, 16
        %v420 = vpop.permute.xlu0 %419
        %421 = vrot.lane.b32.xlu0 %v376, 16
        %v422 = vpop.permute.xlu0 %421
        %423 = vrot.lane.b32.xlu0 %v377, 16
        %v424 = vpop.permute.xlu0 %423
        %425 = vrot.lane.b32.xlu0 %v378, 16
        %v426 = vpop.permute.xlu0 %425
        %v443 = vsel %vm241, %v301, %v396
        %v444 = vsel %vm241, %v304, %v398
        %v445 = vsel %vm241, %v309, %v400
        %v446 = vsel %vm241, %v312, %v402
        %v447 = vsel %vm241, %v317, %v404
        %v448 = vsel %vm241, %v320, %v406
        %v449 = vsel %vm241, %v325, %v408
        %v450 = vsel %vm241, %v328, %v410
        %v451 = vsel %vm241, %v333, %v412
        %v452 = vsel %vm241, %v336, %v414
        %v453 = vsel %vm241, %v341, %v416
        %v454 = vsel %vm241, %v344, %v418
        %v455 = vsel %vm241, %v349, %v420
        %v456 = vsel %vm241, %v352, %v422
        %v457 = vsel %vm241, %v357, %v424
        %v458 = vsel %vm241, %v360, %v426
        %s459 = smul.u32 %s20, 2
        %s460 = sadd.s32 %s459, %s21
        %s461 = smul.u32 %s460, 128
        %v462 = vlaneseq
        %v463 = vand.u32 %v462, 127
        %v464 = vstv %s461
        %v465 = vadd.s32 %v464, %v463
        %vm466 = vcmp.lt.s32.totalorder %v465, 300
        %v467 = vsel %vm466, 1, 0
        %v468 = vcvt.s32.f32 %v467
        %v469 = vld [vmem:[%s159] sm:$0xff]
        %470 = vmatprep.subr.mxu0 0.0
        %471 = vmatpush1.msra.mxu0 %v443
        %472 = vmatprep.subr.mxu0 0.0
        %473 = vmatpush1.msra.mxu0 %v444
        %474 = vmatprep.subr.mxu0 0.0
        %475 = vmatpush1.msra.mxu0 %v445
        %476 = vmatprep.subr.mxu0 0.0
        %477 = vmatpush1.msra.mxu0 %v446
        %478 = vmatprep.subr.mxu0 0.0
        %479 = vmatpush1.msra.mxu0 %v447
        %480 = vmatprep.subr.mxu0 0.0
        %481 = vmatpush1.msra.mxu0 %v448
        %482 = vmatprep.subr.mxu0 0.0
        %483 = vmatpush1.msra.mxu0 %v449
        %484 = vmatprep.subr.mxu0 0.0
        %485 = vmatpush1.msra.mxu0 %v450
        %486 = vmatprep.subr.mxu0 0.0
        %487 = vmatpush1.msra.mxu0 %v451
        %488 = vmatprep.subr.mxu0 0.0
        %489 = vmatpush1.msra.mxu0 %v452
        %490 = vmatprep.subr.mxu0 0.0
        %491 = vmatpush1.msra.mxu0 %v453
        %492 = vmatprep.subr.mxu0 0.0
        %493 = vmatpush1.msra.mxu0 %v454
        %494 = vmatprep.subr.mxu0 0.0
        %495 = vmatpush1.msra.mxu0 %v455
        %496 = vmatprep.subr.mxu0 0.0
        %497 = vmatpush1.msra.mxu0 %v456
        %498 = vmatprep.subr.mxu0 0.0
        %499 = vmatpush1.msra.mxu0 %v457
        %500 = vmatprep.subr.mxu0 0.0
        %501 = vmatpush1.msra.mxu0 %v458
        %502 = vmatprep.subr.mxu0 0.0
        %503 = vmatpush1.msra.mxu0 0.0
        %504 = vmatprep.subr.mxu0 0.0
        %505 = vmatpush1.msra.mxu0 0.0
        %506 = vmatprep.subr.mxu0 0.0
        %507 = vmatpush1.msra.mxu0 0.0
        %508 = vmatprep.subr.mxu0 0.0
        %509 = vmatpush1.msra.mxu0 0.0
        %510 = vmatprep.subr.mxu0 0.0
        %511 = vmatpush1.msra.mxu0 0.0
        %512 = vmatprep.subr.mxu0 0.0
        %513 = vmatpush1.msra.mxu0 0.0
        %514 = vmatprep.subr.mxu0 0.0
        %515 = vmatpush1.msra.mxu0 0.0
        %516 = vmatprep.subr.mxu0 0.0
        %517 = vmatpush1.msra.mxu0 0.0
        %518 = vmatprep.subr.mxu0 0.0
        %519 = vmatpush1.msra.mxu0 0.0
        %520 = vmatprep.subr.mxu0 0.0
        %521 = vmatpush1.msra.mxu0 0.0
        %522 = vmatprep.subr.mxu0 0.0
        %523 = vmatpush1.msra.mxu0 0.0
        %524 = vmatprep.subr.mxu0 0.0
        %525 = vmatpush1.msra.mxu0 0.0
        %526 = vmatprep.subr.mxu0 0.0
        %527 = vmatpush1.msra.mxu0 0.0
        %528 = vmatprep.subr.mxu0 0.0
        %529 = vmatpush1.msra.mxu0 0.0
        %530 = vmatprep.subr.mxu0 0.0
        %531 = vmatpush1.msra.mxu0 0.0
        %532 = vmatprep.subr.mxu0 0.0
        %533 = vmatpush1.msra.mxu0 0.0
        %534 = vmatprep.mubr.f32.mxu0 0.0
        %535 = vmatmul.mubr.f32.gmra.mrb[0].mxu0 %v468
        %v536 = vpop.f32.mrb[0].mxu0
        %v537 = vadd.f32 0.0, %v536
        %v538 = vpop.f32.mrb[0].mxu0
        %539 = vdwg.mxu0
        %v540 = vadd.f32 %v469, %v537
        %vm541 = vcmask 261120
        %542 = vst.msk [vmem:[%s159] sm:$0xff] %vm541, %v540
        %s543 = sand.u32 %s87, 1
        %s544 = scalar_lea.sflag [#allocation3], %s543
        %s545 = sand.u32 %s87, 1
        %s546 = smul.addr %s545, 8
        %s547 = scalar_lea.vmem [#allocation2], %s546
        // Predicated region
        $region33: #{tpu_custom_call.1} parent=27 // pred_check
          %p548 = pneg %p97
        $region34: #{tpu_custom_call.1} parent=27 // pred_check_branch
          %550 = sbr.rel (%p548) target = $region36
        $region35: #{tpu_custom_call.1} parent=27 // pred_region
          %s552 = ssub.s32 128, 128
          %553 = vsyncadd %s544, %s552
          %s554 = smul.addr %s20, 128
          %s555 = scalar_lea.hbm %s2, %s554
          %s557 = sshll.u32 %s547, 4
          %s558 = int_to_ptr.vmem [resolvable:$true] %s557
          %560 = dma.vmem_to_hbm [thread:$0]  %s558, 128, %s555, %s544
        $region36: #{tpu_custom_call.1} parent=27 // pred_fallthru
          _
      $region28: #{tpu_custom_call.1} parent=5 // pred_fallthru
        _
      %p561 = scmp.le.s32.totalorder 2, %s11
      // Predicated region
      $region37: #{tpu_custom_call.1} parent=5 // pred_check
        %p562 = pneg %p561
      $region38: #{tpu_custom_call.1} parent=5 // pred_check_branch
        %564 = sbr.rel (%p562) target = $region40
      $region39: #{tpu_custom_call.1} parent=5 // pred_region
        %s565 = ssub.s32 %s11, 2
        // Predicated region
        $region41: #{tpu_custom_call.1} parent=39 // pred_check
          %p566 = pneg %p103
        $region42: #{tpu_custom_call.1} parent=39 // pred_check_branch
          %568 = sbr.rel (%p566) target = $region44
        $region43: #{tpu_custom_call.1} parent=39 // pred_region
          %s569 = sand.u32 %s88, 1
          %s570 = scalar_lea.sflag [#allocation3], %s569
          %s571 = sand.u32 %s88, 1
          %s572 = smul.addr %s571, 8
          %s573 = scalar_lea.vmem [#allocation2], %s572
          %574 = dma.done %s570, 128
        $region44: #{tpu_custom_call.1} parent=39 // pred_fallthru
          _
      $region40: #{tpu_custom_call.1} parent=5 // pred_fallthru
        _
    $region6: #{tpu_custom_call.1} parent=1 // loop_footer
      %s15 = sadd.s32 1, %s11
    $region7: #{tpu_custom_call.1} parent=1 // loop_footer_branch
      %10 = sbr.rel target = $region3
    $region8: #{tpu_custom_call.1} parent=1 // loop_exit
      _
    %575 = vsyncpa [#allocation3], 1
    %s576 = scalar_lea.sflag [#allocation3], 1
    %577 = vsyncpa %s576, 1

</llo_original>
